<compile_context>
chip_gen: v7x
topology: tpu7x:2x2x1
jax: 0.10.0
libtpu: 0.0.40
codegen_flags: <defaults>
</compile_context>

<pallas_src>
import functools

import jax
import jax.numpy as jnp
from jax.experimental import pallas as pl
from jax.experimental.pallas import tpu as pltpu

_BN_EPS = 1e-5
_LANE = 128


def _round_up(n, m):
    return ((n + m - 1) // m) * m


def _vmem_limit_bytes():
    """~75% of physical VMEM (v5e/v6e: 128 MiB -> 96 MiB, v7x: 64 MiB -> 48 MiB)."""
    cap = 64 * 1024 * 1024
    try:
        info = pltpu.get_tpu_info()
        cap = int(getattr(info, "vmem_capacity_bytes", cap) or cap)
    except Exception:
        pass
    return (cap * 3) // 4


# ----------------------------------------------------------------------------
# Parameter preparation (call once, reuse across forward calls).
# ----------------------------------------------------------------------------
def prepare_params(params):
    """Pad every feature dim to a multiple of 128 and cast weights to bf16.

    Call ONCE (at init) and reuse: re-padding per forward call would roughly
    double parameter HBM traffic.  b1/b2 are dropped here because a bias added
    before training-mode BatchNorm is cancelled by the mean subtraction.
    Padded hidden lanes get gamma = beta = 0 so they stay exactly zero.
    """
    in_dim, hidden = params["w1"].shape
    out_dim = params["w3"].shape[1]
    in_p = _round_up(in_dim, _LANE)
    hid_p = _round_up(hidden, _LANE)
    out_p = _round_up(out_dim, _LANE)

    def pad2(a, r, c):
        return jnp.pad(a, ((0, r - a.shape[0]), (0, c - a.shape[1])))

    return dict(
        w1=pad2(params["w1"], in_p, hid_p).astype(jnp.bfloat16),
        w2=pad2(params["w2"], hid_p, hid_p).astype(jnp.bfloat16),
        w3=pad2(params["w3"], hid_p, out_p).astype(jnp.bfloat16),
        g1=pad2(params["g1"], 1, hid_p),
        be1=pad2(params["be1"], 1, hid_p),
        g2=pad2(params["g2"], 1, hid_p),
        be2=pad2(params["be2"], 1, hid_p),
        b3=pad2(params["b3"], 1, out_p),
        dims=(in_dim, hidden, out_dim, in_p, hid_p, out_p),
    )


# ----------------------------------------------------------------------------
# Fused single-block fast path (small N / small hidden).
# ----------------------------------------------------------------------------
def _bn_relu(h, gamma, beta, inv_n):
    """Fused training-mode BatchNorm1d + ReLU: relu(h * scale + shift).

    One pass over h (sum and sum-of-squares).  NOTE: one-pass variance
    E[h^2]-E[h]^2 can lose precision when |mean| >> std; covered by the
    documented tolerance (bf16 matmul operands dominate the error budget).
    """
    s = jnp.sum(h, axis=0, keepdims=True)
    sq = jnp.sum(h * h, axis=0, keepdims=True)
    mean = s * inv_n
    var = jnp.maximum(sq * inv_n - mean * mean, 0.0)
    scale = gamma * jax.lax.rsqrt(var + _BN_EPS)     # rsqrt -> EUP slot
    shift = beta - mean * scale
    return jnp.maximum(h * scale + shift, 0.0)


def _fused_kernel(x_ref, w1_ref, g1_ref, be1_ref, w2_ref, g2_ref, be2_ref,
                  w3_ref, b3_ref, o_ref):
    inv_n = 1.0 / float(x_ref.shape[0])

    # Layer 1 (bias elided -> cancelled by BN), fused BN + ReLU.
    h1 = jnp.dot(x_ref[...], w1_ref[...], preferred_element_type=jnp.float32)
    a1 = _bn_relu(h1, g1_ref[...], be1_ref[...], inv_n)

    # Layer 2 (bias elided), fused BN + ReLU.  bf16 operands, f32 accumulation.
    h2 = jnp.dot(a1.astype(jnp.bfloat16), w2_ref[...],
                 preferred_element_type=jnp.float32)
    a2 = _bn_relu(h2, g2_ref[...], be2_ref[...], inv_n)

    # Layer 3 (bias kept).
    out = jnp.dot(a2.astype(jnp.bfloat16), w3_ref[...],
                  preferred_element_type=jnp.float32) + b3_ref[...]
    o_ref[...] = out.astype(o_ref.dtype)
    # TODO(synk): for very large hidden, stage w2/w3 through pl.ANY + manual
    # pltpu.make_async_copy so their DMA overlaps layer-1 compute (with
    # grid=() all input DMAs complete before the body runs).


# ----------------------------------------------------------------------------
# Batch-tiled multi-pass path (large N): 3 pallas_calls.
# ----------------------------------------------------------------------------
def _pass1_kernel(x_ref, w1_ref, h1_ref, st_ref):
    """h1 = x @ w1 (spilled as bf16) + per-column sum / sum-of-squares."""
    h1 = jnp.dot(x_ref[...], w1_ref[...], preferred_element_type=jnp.float32)
    h1_ref[...] = h1.astype(h1_ref.dtype)

    @pl.when(pl.program_id(0) == 0)
    def _():
        st_ref[...] = jnp.zeros_like(st_ref)

    st_ref[...] += jnp.concatenate(
        [jnp.sum(h1, axis=0, keepdims=True),
         jnp.sum(h1 * h1, axis=0, keepdims=True)], axis=0)


def _pass2_kernel(h1_ref, s1_ref, w2_ref, h2_ref, st_ref, *, tile_n, n_valid):
    """a1 = relu(bn1(h1)); h2 = a1 @ w2 (spilled bf16) + its sum / sumsq."""
    i = pl.program_id(0)
    s = s1_ref[...]
    a1 = jnp.maximum(h1_ref[...].astype(jnp.float32) * s[0:1, :] + s[1:2, :], 0.0)
    if n_valid is not None:
        # Zero padded batch rows so they contribute nothing to layer-2 stats.
        rows = i * tile_n + jax.lax.broadcasted_iota(jnp.int32, (tile_n, 1), 0)
        a1 = jnp.where(rows < n_valid, a1, 0.0)
    h2 = jnp.dot(a1.astype(jnp.bfloat16), w2_ref[...],
                 preferred_element_type=jnp.float32)
    h2_ref[...] = h2.astype(h2_ref.dtype)

    @pl.when(i == 0)
    def _():
        st_ref[...] = jnp.zeros_like(st_ref)

    st_ref[...] += jnp.concatenate(
        [jnp.sum(h2, axis=0, keepdims=True),
         jnp.sum(h2 * h2, axis=0, keepdims=True)], axis=0)


def _pass3_kernel(h2_ref, s2_ref, w3_ref, b3_ref, o_ref):
    """out = relu(bn2(h2)) @ w3 + b3."""
    s = s2_ref[...]
    a2 = jnp.maximum(h2_ref[...].astype(jnp.float32) * s[0:1, :] + s[1:2, :], 0.0)
    out = jnp.dot(a2.astype(jnp.bfloat16), w3_ref[...],
                  preferred_element_type=jnp.float32) + b3_ref[...]
    o_ref[...] = out.astype(o_ref.dtype)


def _scale_shift(stats, gamma, beta, n):
    """Fold BN(mean, var, gamma, beta) into scale/shift rows [2, H] (f32)."""
    mean = stats[0:1, :] / n
    var = jnp.maximum(stats[1:2, :] / n - mean * mean, 0.0)
    scale = gamma * jax.lax.rsqrt(var + _BN_EPS)
    shift = beta - mean * scale
    return jnp.concatenate([scale, shift], axis=0)


def _fused_vmem_estimate(n, in_p, hid_p, out_p):
    weights = 2 * (in_p * hid_p + hid_p * hid_p + hid_p * out_p)
    act = n * (2 * in_p + 8 * hid_p + 4 * out_p)    # bf16 x, f32 h1/h2, f32 out
    return weights + act + (2 << 20)


def _choose_tile_n(n, in_p, hid_p, out_p, limit):
    budget = int(limit * 0.6)
    w_res = 2 * hid_p * max(in_p, hid_p, out_p)      # heaviest resident weight
    per_row = 4 * in_p + 24 * hid_p + 8 * out_p      # 2x-buffered blocks + f32 temps
    for t in (1024, 512, 256, 128, 64, 32, 16):
        if t <= _round_up(max(n, 16), 16) and w_res + t * per_row <= budget:
            return t
    return 16


# ----------------------------------------------------------------------------
# Forward
# ----------------------------------------------------------------------------
def bzhang_mlp_forward(x, prepared, *, tile_n=None, force_tiled=False):
    """Forward pass.  `prepared` must come from prepare_params().

    BatchNorm uses batch statistics (training mode).  For best layout keep the
    batch a multiple of 8 (16 with bf16 activations); any N is still correct.
    """
    n, in_dim_x = x.shape
    in_dim, hidden, out_dim, in_p, hid_p, out_p = prepared["dims"]
    assert in_dim_x == in_dim, (in_dim_x, in_dim)

    limit = _vmem_limit_bytes()
    x_p = jnp.pad(x, ((0, 0), (0, in_p - in_dim))).astype(jnp.bfloat16)

    use_fused = (not force_tiled) and (
        _fused_vmem_estimate(n, in_p, hid_p, out_p) <= limit // 2)

    if use_fused:
        vmem = pl.BlockSpec(memory_space=pltpu.MemorySpace.VMEM)
        out = pl.pallas_call(
            _fused_kernel,
            out_shape=jax.ShapeDtypeStruct((n, out_p), jnp.float32),
            in_specs=[vmem] * 9,
            out_specs=vmem,
            compiler_params=pltpu.CompilerParams(vmem_limit_bytes=limit),
        )(x_p, prepared["w1"], prepared["g1"], prepared["be1"],
          prepared["w2"], prepared["g2"], prepared["be2"],
          prepared["w3"], prepared["b3"])
        return out[:, :out_dim]

    # ---------------- batch-tiled multi-pass path ----------------
    if tile_n is None:
        tile_n = _choose_tile_n(n, in_p, hid_p, out_p, limit)
    tile_n = _round_up(min(tile_n, _round_up(n, 16)), 16)
    n_pad = _round_up(n, tile_n)
    grid = (n_pad // tile_n,)
    n_valid = None if n_pad == n else n
    if n_pad != n:
        x_p = jnp.pad(x_p, ((0, n_pad - n), (0, 0)))  # zero rows -> zero h1

    cp_arb = pltpu.CompilerParams(dimension_semantics=("arbitrary",),
                                  vmem_limit_bytes=limit)
    cp_par = pltpu.CompilerParams(dimension_semantics=("parallel",),
                                  vmem_limit_bytes=limit)

    # Pass 1: h1 tiles (bf16 spill) + layer-1 column stats (accumulator output).
    h1, st1 = pl.pallas_call(
        _pass1_kernel,
        grid=grid,
        out_shape=(jax.ShapeDtypeStruct((n_pad, hid_p), jnp.bfloat16),
                   jax.ShapeDtypeStruct((2, hid_p), jnp.float32)),
        in_specs=[pl.BlockSpec((tile_n, in_p), lambda i: (i, 0)),
                  pl.BlockSpec((in_p, hid_p), lambda i: (0, 0))],
        out_specs=(pl.BlockSpec((tile_n, hid_p), lambda i: (i, 0)),
                   pl.BlockSpec((2, hid_p), lambda i: (0, 0))),
        compiler_params=cp_arb,
    )(x_p, prepared["w1"])

    s1 = _scale_shift(st1, prepared["g1"], prepared["be1"], n)

    # Pass 2: normalize h1, layer-2 matmul, h2 spill + layer-2 column stats.
    h2, st2 = pl.pallas_call(
        functools.partial(_pass2_kernel, tile_n=tile_n, n_valid=n_valid),
        grid=grid,
        out_shape=(jax.ShapeDtypeStruct((n_pad, hid_p), jnp.bfloat16),
                   jax.ShapeDtypeStruct((2, hid_p), jnp.float32)),
        in_specs=[pl.BlockSpec((tile_n, hid_p), lambda i: (i, 0)),
                  pl.BlockSpec((2, hid_p), lambda i: (0, 0)),
                  pl.BlockSpec((hid_p, hid_p), lambda i: (0, 0))],
        out_specs=(pl.BlockSpec((tile_n, hid_p), lambda i: (i, 0)),
                   pl.BlockSpec((2, hid_p), lambda i: (0, 0))),
        compiler_params=cp_arb,
    )(h1, s1, prepared["w2"])

    s2 = _scale_shift(st2, prepared["g2"], prepared["be2"], n)

    # Pass 3: normalize h2, layer-3 matmul + bias.  Batch axis "parallel"
    # (megacore sharding on v7x; no-op on single-TC v5e/v6e).
    out = pl.pallas_call(
        _pass3_kernel,
        grid=grid,
        out_shape=jax.ShapeDtypeStruct((n_pad, out_p), jnp.float32),
        in_specs=[pl.BlockSpec((tile_n, hid_p), lambda i: (i, 0)),
                  pl.BlockSpec((2, hid_p), lambda i: (0, 0)),
                  pl.BlockSpec((hid_p, out_p), lambda i: (0, 0)),
                  pl.BlockSpec((1, out_p), lambda i: (0, 0))],
        out_specs=pl.BlockSpec((tile_n, out_p), lambda i: (i, 0)),
        compiler_params=cp_par,
    )(h2, s2, prepared["w3"], prepared["b3"])

    # TODO(synk): combine per-core partial sum/sumsq (CMEM or follow-up reduce)
    # so passes 1/2 can also be marked "parallel" on v7x.
    return out[:n, :out_dim]


# ----------------------------------------------------------------------------
# Parameters / reference / test
# ----------------------------------------------------------------------------
def init_params(key, in_dim, out_dim, hidden_size):
    """Deterministic synthetic parameters matching nn.Linear / nn.BatchNorm1d."""
    ks = jax.random.split(key, 6)

    def linear(kw, kb, fan_in, fan_out):
        bound = 1.0 / jnp.sqrt(fan_in)    # PyTorch Linear default init
        w = jax.random.uniform(kw, (fan_in, fan_out), jnp.float32, -bound, bound)
        b = jax.random.uniform(kb, (1, fan_out), jnp.float32, -bound, bound)
        return w, b

    w1, b1 = linear(ks[0], ks[1], in_dim, hidden_size)
    w2, b2 = linear(ks[2], ks[3], hidden_size, hidden_size)
    w3, b3 = linear(ks[4], ks[5], hidden_size, out_dim)

    return dict(
        w1=w1, b1=b1,
        g1=jnp.ones((1, hidden_size), jnp.float32),
        be1=jnp.zeros((1, hidden_size), jnp.float32),
        w2=w2, b2=b2,
        g2=jnp.ones((1, hidden_size), jnp.float32),
        be2=jnp.zeros((1, hidden_size), jnp.float32),
        w3=w3, b3=b3,
    )


def _reference(x, p):
    """Pure f32 JAX reference matching PyTorch exactly (biases included)."""
    def bn_relu(h, g, b):
        m = jnp.mean(h, axis=0, keepdims=True)
        v = jnp.mean((h - m) ** 2, axis=0, keepdims=True)
        return jnp.maximum((h - m) / jnp.sqrt(v + _BN_EPS) * g + b, 0.0)

    h = bn_relu(x @ p["w1"] + p["b1"], p["g1"], p["be1"])
    h = bn_relu(h @ p["w2"] + p["b2"], p["g2"], p["be2"])
    return h @ p["w3"] + p["b3"]


if __name__ == "__main__":
    key = jax.random.PRNGKey(0)
    kx1, kx2, kp = jax.random.split(key, 3)

    N, IN_DIM, HIDDEN, OUT_DIM = 8, 32, 64, 16
    params = init_params(kp, IN_DIM, OUT_DIM, HIDDEN)
    prepared = prepare_params(params)

    # Tolerance is loose because matmul operands are bf16 (f32 accumulation);
    # BN's 1/std scaling amplifies the bf16 rounding by a few x.
    ATOL, RTOL = 1e-1, 5e-2

    # 1) Small batch -> fused single-block fast path.
    x = jax.random.normal(kx1, (N, IN_DIM), jnp.float32)
    y = bzhang_mlp_forward(x, prepared)
    jax.block_until_ready(y)
    y_ref = _reference(x, params)
    assert y.shape == (N, OUT_DIM)
    assert jnp.allclose(y, y_ref, atol=ATOL, rtol=RTOL)

    # 2) Larger batch, forced through the batch-tiled 3-pass path
    #    (N not a multiple of the tile -> exercises the padded-row masking).
    N2 = 200
    x2 = jax.random.normal(kx2, (N2, IN_DIM), jnp.float32)
    y2 = bzhang_mlp_forward(x2, prepared, force_tiled=True, tile_n=64)
    jax.block_until_ready(y2)
    y2_ref = _reference(x2, params)
    assert y2.shape == (N2, OUT_DIM)
    assert jnp.allclose(y2, y2_ref, atol=ATOL, rtol=RTOL)

    print("KERNEL_OK")
</pallas_src>

<mosaic_0001>
module attributes {stable_mosaic.version = 11 : i64} {
  func.func @_fused_kernel(%arg0: memref<8x128xbf16, #tpu.memory_space<vmem>>, %arg1: memref<128x128xbf16, #tpu.memory_space<vmem>>, %arg2: memref<1x128xf32, #tpu.memory_space<vmem>>, %arg3: memref<1x128xf32, #tpu.memory_space<vmem>>, %arg4: memref<128x128xbf16, #tpu.memory_space<vmem>>, %arg5: memref<1x128xf32, #tpu.memory_space<vmem>>, %arg6: memref<1x128xf32, #tpu.memory_space<vmem>>, %arg7: memref<128x128xbf16, #tpu.memory_space<vmem>>, %arg8: memref<1x128xf32, #tpu.memory_space<vmem>>, %arg9: memref<8x128xf32, #tpu.memory_space<vmem>>) attributes {dimension_semantics = [], scalar_prefetch = 0 : i64, scratch_operands = 0 : i64, tpu.core_type = #tpu.core_type<tc>} {
    %c0 = arith.constant 0 : index
    %c0_0 = arith.constant 0 : index
    %0 = vector.load %arg0[%c0, %c0_0] : memref<8x128xbf16, #tpu.memory_space<vmem>>, vector<8x128xbf16>
    %c0_1 = arith.constant 0 : index
    %c0_2 = arith.constant 0 : index
    %1 = vector.load %arg1[%c0_1, %c0_2] : memref<128x128xbf16, #tpu.memory_space<vmem>>, vector<128x128xbf16>
    %cst = arith.constant dense<0.000000e+00> : vector<8x128xf32>
    %2 = tpu.matmul %0, %1, %cst {dimension_numbers = #tpu.dot_dimension_numbers<[1], [0], [0], [1], [0, 0, 1, 1], [], []>} : vector<8x128xbf16>, vector<128x128xbf16>, vector<8x128xf32> -> vector<8x128xf32>
    %c0_3 = arith.constant 0 : index
    %c0_4 = arith.constant 0 : index
    %3 = vector.load %arg2[%c0_3, %c0_4] : memref<1x128xf32, #tpu.memory_space<vmem>>, vector<1x128xf32>
    %c0_5 = arith.constant 0 : index
    %c0_6 = arith.constant 0 : index
    %4 = vector.load %arg3[%c0_5, %c0_6] : memref<1x128xf32, #tpu.memory_space<vmem>>, vector<1x128xf32>
    %cst_7 = arith.constant dense<0.000000e+00> : vector<128xf32>
    %5 = vector.multi_reduction <add>, %2, %cst_7 [0] : vector<8x128xf32> to vector<128xf32>
    %6 = vector.shape_cast %5 : vector<128xf32> to vector<1x128xf32>
    %7 = arith.mulf %2, %2 : vector<8x128xf32>
    %cst_8 = arith.constant dense<0.000000e+00> : vector<128xf32>
    %8 = vector.multi_reduction <add>, %7, %cst_8 [0] : vector<8x128xf32> to vector<128xf32>
    %9 = vector.shape_cast %8 : vector<128xf32> to vector<1x128xf32>
    %cst_9 = arith.constant 1.250000e-01 : f32
    %10 = vector.broadcast %cst_9 : f32 to vector<1x128xf32>
    %11 = arith.mulf %6, %10 : vector<1x128xf32>
    %cst_10 = arith.constant 1.250000e-01 : f32
    %12 = vector.broadcast %cst_10 : f32 to vector<1x128xf32>
    %13 = arith.mulf %9, %12 : vector<1x128xf32>
    %14 = arith.mulf %11, %11 : vector<1x128xf32>
    %15 = arith.subf %13, %14 : vector<1x128xf32>
    %cst_11 = arith.constant 0.000000e+00 : f32
    %16 = vector.broadcast %cst_11 : f32 to vector<1x128xf32>
    %17 = arith.maximumf %15, %16 : vector<1x128xf32>
    %cst_12 = arith.constant 9.99999974E-6 : f32
    %18 = vector.broadcast %cst_12 : f32 to vector<1x128xf32>
    %19 = arith.addf %17, %18 : vector<1x128xf32>
    %20 = math.rsqrt %19 : vector<1x128xf32>
    %21 = arith.mulf %3, %20 : vector<1x128xf32>
    %22 = arith.mulf %11, %21 : vector<1x128xf32>
    %23 = arith.subf %4, %22 : vector<1x128xf32>
    %24 = vector.broadcast %21 : vector<1x128xf32> to vector<8x128xf32>
    %25 = arith.mulf %2, %24 : vector<8x128xf32>
    %26 = vector.broadcast %23 : vector<1x128xf32> to vector<8x128xf32>
    %27 = arith.addf %25, %26 : vector<8x128xf32>
    %cst_13 = arith.constant 0.000000e+00 : f32
    %28 = vector.broadcast %cst_13 : f32 to vector<8x128xf32>
    %29 = arith.maximumf %27, %28 : vector<8x128xf32>
    %30 = arith.truncf %29 : vector<8x128xf32> to vector<8x128xbf16>
    %c0_14 = arith.constant 0 : index
    %c0_15 = arith.constant 0 : index
    %31 = vector.load %arg4[%c0_14, %c0_15] : memref<128x128xbf16, #tpu.memory_space<vmem>>, vector<128x128xbf16>
    %cst_16 = arith.constant dense<0.000000e+00> : vector<8x128xf32>
    %32 = tpu.matmul %30, %31, %cst_16 {dimension_numbers = #tpu.dot_dimension_numbers<[1], [0], [0], [1], [0, 0, 1, 1], [], []>} : vector<8x128xbf16>, vector<128x128xbf16>, vector<8x128xf32> -> vector<8x128xf32>
    %c0_17 = arith.constant 0 : index
    %c0_18 = arith.constant 0 : index
    %33 = vector.load %arg5[%c0_17, %c0_18] : memref<1x128xf32, #tpu.memory_space<vmem>>, vector<1x128xf32>
    %c0_19 = arith.constant 0 : index
    %c0_20 = arith.constant 0 : index
    %34 = vector.load %arg6[%c0_19, %c0_20] : memref<1x128xf32, #tpu.memory_space<vmem>>, vector<1x128xf32>
    %cst_21 = arith.constant dense<0.000000e+00> : vector<128xf32>
    %35 = vector.multi_reduction <add>, %32, %cst_21 [0] : vector<8x128xf32> to vector<128xf32>
    %36 = vector.shape_cast %35 : vector<128xf32> to vector<1x128xf32>
    %37 = arith.mulf %32, %32 : vector<8x128xf32>
    %cst_22 = arith.constant dense<0.000000e+00> : vector<128xf32>
    %38 = vector.multi_reduction <add>, %37, %cst_22 [0] : vector<8x128xf32> to vector<128xf32>
    %39 = vector.shape_cast %38 : vector<128xf32> to vector<1x128xf32>
    %cst_23 = arith.constant 1.250000e-01 : f32
    %40 = vector.broadcast %cst_23 : f32 to vector<1x128xf32>
    %41 = arith.mulf %36, %40 : vector<1x128xf32>
    %cst_24 = arith.constant 1.250000e-01 : f32
    %42 = vector.broadcast %cst_24 : f32 to vector<1x128xf32>
    %43 = arith.mulf %39, %42 : vector<1x128xf32>
    %44 = arith.mulf %41, %41 : vector<1x128xf32>
    %45 = arith.subf %43, %44 : vector<1x128xf32>
    %cst_25 = arith.constant 0.000000e+00 : f32
    %46 = vector.broadcast %cst_25 : f32 to vector<1x128xf32>
    %47 = arith.maximumf %45, %46 : vector<1x128xf32>
    %cst_26 = arith.constant 9.99999974E-6 : f32
    %48 = vector.broadcast %cst_26 : f32 to vector<1x128xf32>
    %49 = arith.addf %47, %48 : vector<1x128xf32>
    %50 = math.rsqrt %49 : vector<1x128xf32>
    %51 = arith.mulf %33, %50 : vector<1x128xf32>
    %52 = arith.mulf %41, %51 : vector<1x128xf32>
    %53 = arith.subf %34, %52 : vector<1x128xf32>
    %54 = vector.broadcast %51 : vector<1x128xf32> to vector<8x128xf32>
    %55 = arith.mulf %32, %54 : vector<8x128xf32>
    %56 = vector.broadcast %53 : vector<1x128xf32> to vector<8x128xf32>
    %57 = arith.addf %55, %56 : vector<8x128xf32>
    %cst_27 = arith.constant 0.000000e+00 : f32
    %58 = vector.broadcast %cst_27 : f32 to vector<8x128xf32>
    %59 = arith.maximumf %57, %58 : vector<8x128xf32>
    %60 = arith.truncf %59 : vector<8x128xf32> to vector<8x128xbf16>
    %c0_28 = arith.constant 0 : index
    %c0_29 = arith.constant 0 : index
    %61 = vector.load %arg7[%c0_28, %c0_29] : memref<128x128xbf16, #tpu.memory_space<vmem>>, vector<128x128xbf16>
    %cst_30 = arith.constant dense<0.000000e+00> : vector<8x128xf32>
    %62 = tpu.matmul %60, %61, %cst_30 {dimension_numbers = #tpu.dot_dimension_numbers<[1], [0], [0], [1], [0, 0, 1, 1], [], []>} : vector<8x128xbf16>, vector<128x128xbf16>, vector<8x128xf32> -> vector<8x128xf32>
    %c0_31 = arith.constant 0 : index
    %c0_32 = arith.constant 0 : index
    %63 = vector.load %arg8[%c0_31, %c0_32] : memref<1x128xf32, #tpu.memory_space<vmem>>, vector<1x128xf32>
    %64 = vector.broadcast %63 : vector<1x128xf32> to vector<8x128xf32>
    %65 = arith.addf %62, %64 : vector<8x128xf32>
    %c0_33 = arith.constant 0 : index
    %c0_34 = arith.constant 0 : index
    %66 = vector.load %arg9[%c0_33, %c0_34] : memref<8x128xf32, #tpu.memory_space<vmem>>, vector<8x128xf32>
    tpu.vector_store %arg9[%c0_33, %c0_34], %65 {strides = array<i32>} : memref<8x128xf32, #tpu.memory_space<vmem>>, vector<8x128xf32>,
    return
  }
}

</mosaic_0001>

<llo_original>
// kernel: tpu_custom_call.1
$region0: #{tpu_custom_call.1}
  #allocation0 [shape = 'u32[]', space=smem, size = 0x4, offset = 0x4, fixed_abs, tag = 'smem constant byte address 0x4 - core index']
  #allocation1 [shape = 'u32[144,128]{1,0:T(1,128)}', space=vmem, size = 0x12000, scoped, tag = 'internal scratch']
  %s0 = inlined_call_operand.hbm [shape: bf16[8,128], index: 0, kind: input, shape index: {}]
  %s1 = inlined_call_operand.hbm [shape: bf16[128,128], index: 1, kind: input, shape index: {}]
  %s2 = inlined_call_operand.vmem [shape: f32[1,128], index: 2, kind: input, shape index: {}]
  %s3 = inlined_call_operand.vmem [shape: f32[1,128], index: 3, kind: input, shape index: {}]
  %s4 = inlined_call_operand.hbm [shape: bf16[128,128], index: 4, kind: input, shape index: {}]
  %s5 = inlined_call_operand.vmem [shape: f32[1,128], index: 5, kind: input, shape index: {}]
  %s6 = inlined_call_operand.vmem [shape: f32[1,128], index: 6, kind: input, shape index: {}]
  %s7 = inlined_call_operand.hbm [shape: bf16[128,128], index: 7, kind: input, shape index: {}]
  %s8 = inlined_call_operand.vmem [shape: f32[1,128], index: 8, kind: input, shape index: {}]
  %s9 = inlined_call_operand.hbm [shape: f32[8,128], index: 9, kind: output, shape index: {}]
  %s10 = sld [smem:[#allocation0]]
  $region62: #{tpu_custom_call.1} parent=0
    _
  %s12 = ssub.s32 1, %s10
  %s13 = scalar_select 0, %s12, %s10
  $region1: #{tpu_custom_call.1} parent=0
    #allocation2 [shape = 'u8[2048]{0}', space=vmem, size = 0x800, scoped, tag = 'input window, operand 0, single buffered']
    #allocation3 [shape = 's32[1]{0}', space=sflag, size = 0x4, scoped, tag = 'scoped memory for tpu_custom_call.1']
    #allocation4 [shape = 's32[1]{0}', space=sflag, size = 0x4, scoped, tag = 'scoped memory for tpu_custom_call.1']
    #allocation5 [shape = 'u8[32768]{0}', space=vmem, size = 0x8000, scoped, tag = 'input window, operand 1, single buffered']
    #allocation6 [shape = 's32[1]{0}', space=sflag, size = 0x4, scoped, tag = 'scoped memory for tpu_custom_call.1']
    #allocation7 [shape = 'u8[32768]{0}', space=vmem, size = 0x8000, scoped, tag = 'input window, operand 4, single buffered']
    #allocation8 [shape = 'u8[32768]{0}', space=vmem, size = 0x8000, scoped, tag = 'input window, operand 7, single buffered']
    #allocation9 [shape = 's32[1]{0}', space=sflag, size = 0x4, scoped, tag = 'scoped memory for tpu_custom_call.1']
    #allocation10 [shape = 'u8[4096]{0}', space=vmem, size = 0x1000, scoped, tag = 'output window, operand 0, single buffered']
    %14 = vsyncpa [#allocation3], 0
    %15 = vsyncpa [#allocation6], 0
    %16 = vsyncpa [#allocation9], 0
    %17 = vsyncpa [#allocation4], 0
    // Predicated region
    $region2: #{tpu_custom_call.1} parent=1 // pred_check
      _
    $region3: #{tpu_custom_call.1} parent=1 // pred_check_branch
      %19 = sbr.rel (0) target = $region5
    $region4: #{tpu_custom_call.1} parent=1 // pred_region
      %s21 = ssub.s32 64, 64
      %22 = vsyncadd [#allocation3], %s21
      %s24 = sshll.u32 [#allocation2], 4
      %s25 = int_to_ptr.vmem [resolvable:$true] %s24
      %27 = dma.hbm_to_vmem [thread:$0]  %s0, 64, %s25, [#allocation3]
    $region5: #{tpu_custom_call.1} parent=1 // pred_fallthru
      _
    // Predicated region
    $region6: #{tpu_custom_call.1} parent=1 // pred_check
      _
    $region7: #{tpu_custom_call.1} parent=1 // pred_check_branch
      %29 = sbr.rel (0) target = $region9
    $region8: #{tpu_custom_call.1} parent=1 // pred_region
      %s31 = ssub.s32 1024, 1024
      %32 = vsyncadd [#allocation6], %s31
      %s33 = sshll.u32 [#allocation5], 4
      %s34 = int_to_ptr.vmem [resolvable:$true] %s33
      %39 = dma.hbm_to_vmem [thread:$0]  %s1, 1024, %s34, [#allocation6], 64, 64, 4
    $region9: #{tpu_custom_call.1} parent=1 // pred_fallthru
      _
    // Predicated region
    $region10: #{tpu_custom_call.1} parent=1 // pred_check
      _
    $region11: #{tpu_custom_call.1} parent=1 // pred_check_branch
      %41 = sbr.rel (0) target = $region13
    $region12: #{tpu_custom_call.1} parent=1 // pred_region
      _
    $region13: #{tpu_custom_call.1} parent=1 // pred_fallthru
      _
    // Predicated region
    $region14: #{tpu_custom_call.1} parent=1 // pred_check
      _
    $region15: #{tpu_custom_call.1} parent=1 // pred_check_branch
      %43 = sbr.rel (0) target = $region17
    $region16: #{tpu_custom_call.1} parent=1 // pred_region
      _
    $region17: #{tpu_custom_call.1} parent=1 // pred_fallthru
      _
    // Predicated region
    $region18: #{tpu_custom_call.1} parent=1 // pred_check
      _
    $region19: #{tpu_custom_call.1} parent=1 // pred_check_branch
      %45 = sbr.rel (0) target = $region21
    $region20: #{tpu_custom_call.1} parent=1 // pred_region
      %s47 = ssub.s32 1024, 1024
      %48 = vsyncadd [#allocation6], %s47
      %s49 = sshll.u32 [#allocation7], 4
      %s50 = int_to_ptr.vmem [resolvable:$true] %s49
      %55 = dma.hbm_to_vmem [thread:$0]  %s4, 1024, %s50, [#allocation6], 64, 64, 4
    $region21: #{tpu_custom_call.1} parent=1 // pred_fallthru
      _
    // Predicated region
    $region22: #{tpu_custom_call.1} parent=1 // pred_check
      _
    $region23: #{tpu_custom_call.1} parent=1 // pred_check_branch
      %57 = sbr.rel (0) target = $region25
    $region24: #{tpu_custom_call.1} parent=1 // pred_region
      _
    $region25: #{tpu_custom_call.1} parent=1 // pred_fallthru
      _
    // Predicated region
    $region26: #{tpu_custom_call.1} parent=1 // pred_check
      _
    $region27: #{tpu_custom_call.1} parent=1 // pred_check_branch
      %59 = sbr.rel (0) target = $region29
    $region28: #{tpu_custom_call.1} parent=1 // pred_region
      _
    $region29: #{tpu_custom_call.1} parent=1 // pred_fallthru
      _
    // Predicated region
    $region30: #{tpu_custom_call.1} parent=1 // pred_check
      _
    $region31: #{tpu_custom_call.1} parent=1 // pred_check_branch
      %61 = sbr.rel (0) target = $region33
    $region32: #{tpu_custom_call.1} parent=1 // pred_region
      %s63 = ssub.s32 1024, 1024
      %64 = vsyncadd [#allocation9], %s63
      %s65 = sshll.u32 [#allocation8], 4
      %s66 = int_to_ptr.vmem [resolvable:$true] %s65
      %71 = dma.hbm_to_vmem [thread:$0]  %s7, 1024, %s66, [#allocation9], 64, 64, 4
    $region33: #{tpu_custom_call.1} parent=1 // pred_fallthru
      _
    // Predicated region
    $region34: #{tpu_custom_call.1} parent=1 // pred_check
      _
    $region35: #{tpu_custom_call.1} parent=1 // pred_check_branch
      %73 = sbr.rel (0) target = $region37
    $region36: #{tpu_custom_call.1} parent=1 // pred_region
      _
    $region37: #{tpu_custom_call.1} parent=1 // pred_fallthru
      _
    // Predicated region
    $region38: #{tpu_custom_call.1} parent=1 // pred_check
      _
    $region39: #{tpu_custom_call.1} parent=1 // pred_check_branch
      %75 = sbr.rel (0) target = $region41
    $region40: #{tpu_custom_call.1} parent=1 // pred_region
      %76 = dma.done [#allocation3], 64
    $region41: #{tpu_custom_call.1} parent=1 // pred_fallthru
      _
    // Predicated region
    $region42: #{tpu_custom_call.1} parent=1 // pred_check
      _
    $region43: #{tpu_custom_call.1} parent=1 // pred_check_branch
      %78 = sbr.rel (0) target = $region45
    $region44: #{tpu_custom_call.1} parent=1 // pred_region
      %79 = dma.done [#allocation6], 1024
    $region45: #{tpu_custom_call.1} parent=1 // pred_fallthru
      _
    // Predicated region
    $region46: #{tpu_custom_call.1} parent=1 // pred_check
      _
    $region47: #{tpu_custom_call.1} parent=1 // pred_check_branch
      %81 = sbr.rel (0) target = $region49
    $region48: #{tpu_custom_call.1} parent=1 // pred_region
      %82 = dma.done [#allocation6], 1024
    $region49: #{tpu_custom_call.1} parent=1 // pred_fallthru
      _
    // Predicated region
    $region50: #{tpu_custom_call.1} parent=1 // pred_check
      _
    $region51: #{tpu_custom_call.1} parent=1 // pred_check_branch
      %84 = sbr.rel (0) target = $region53
    $region52: #{tpu_custom_call.1} parent=1 // pred_region
      %85 = dma.done [#allocation9], 1024
    $region53: #{tpu_custom_call.1} parent=1 // pred_fallthru
      _
    %v87 = vld [vmem:[#allocation2] sm:$0xf]
    %v88 = vld [vmem:[#allocation5] sm:$0xf]
    %v89 = vld [vmem:[#allocation5 + $0x4] sm:$0xf]
    %v90 = vld [vmem:[#allocation5 + $0x8] sm:$0xf]
    %v91 = vld [vmem:[#allocation5 + $0xc] sm:$0xf]
    %v92 = vld [vmem:[#allocation5 + $0x10] sm:$0xf]
    %v93 = vld [vmem:[#allocation5 + $0x14] sm:$0xf]
    %v94 = vld [vmem:[#allocation5 + $0x18] sm:$0xf]
    %v95 = vld [vmem:[#allocation5 + $0x1c] sm:$0xf]
    %v96 = vld [vmem:[#allocation5 + $0x20] sm:$0xf]
    %v97 = vld [vmem:[#allocation5 + $0x24] sm:$0xf]
    %v98 = vld [vmem:[#allocation5 + $0x28] sm:$0xf]
    %v99 = vld [vmem:[#allocation5 + $0x2c] sm:$0xf]
    %v100 = vld [vmem:[#allocation5 + $0x30] sm:$0xf]
    %v101 = vld [vmem:[#allocation5 + $0x34] sm:$0xf]
    %v102 = vld [vmem:[#allocation5 + $0x38] sm:$0xf]
    %v103 = vld [vmem:[#allocation5 + $0x3c] sm:$0xf]
    %v120 = vunpack.c.l.b16 %v88
    %v121 = vunpack.c.l.b16 %v89
    %v122 = vunpack.c.l.b16 %v90
    %v123 = vunpack.c.l.b16 %v91
    %v124 = vunpack.c.l.b16 %v92
    %v125 = vunpack.c.l.b16 %v93
    %v126 = vunpack.c.l.b16 %v94
    %v127 = vunpack.c.l.b16 %v95
    %v128 = vunpack.c.l.b16 %v96
    %v129 = vunpack.c.l.b16 %v97
    %v130 = vunpack.c.l.b16 %v98
    %v131 = vunpack.c.l.b16 %v99
    %v132 = vunpack.c.l.b16 %v100
    %v133 = vunpack.c.l.b16 %v101
    %v134 = vunpack.c.l.b16 %v102
    %v135 = vunpack.c.l.b16 %v103
    %v136 = vpack.c.b16 %v121, %v120
    %v137 = vpack.c.b16 %v123, %v122
    %v138 = vpack.c.b16 %v125, %v124
    %v139 = vpack.c.b16 %v127, %v126
    %v140 = vpack.c.b16 %v129, %v128
    %v141 = vpack.c.b16 %v131, %v130
    %v142 = vpack.c.b16 %v133, %v132
    %v143 = vpack.c.b16 %v135, %v134
    %152 = vmatprep.subr.bf16.mxu0 0
    %153 = vmatpush1.bf16.msra.mxu0 %v136
    %154 = vmatprep.subr.bf16.mxu0 0
    %155 = vmatpush1.bf16.msra.mxu0 %v137
    %156 = vmatprep.subr.bf16.mxu0 0
    %157 = vmatpush1.bf16.msra.mxu0 %v138
    %158 = vmatprep.subr.bf16.mxu0 0
    %159 = vmatpush1.bf16.msra.mxu0 %v139
    %160 = vmatprep.subr.bf16.mxu0 0
    %161 = vmatpush1.bf16.msra.mxu0 %v140
    %162 = vmatprep.subr.bf16.mxu0 0
    %163 = vmatpush1.bf16.msra.mxu0 %v141
    %164 = vmatprep.subr.bf16.mxu0 0
    %165 = vmatpush1.bf16.msra.mxu0 %v142
    %166 = vmatprep.subr.bf16.mxu0 0
    %167 = vmatpush1.bf16.msra.mxu0 %v143
    %168 = vmatprep.subr.bf16.mxu0 0
    %169 = vmatpush1.bf16.msra.mxu0 0
    %170 = vmatprep.subr.bf16.mxu0 0
    %171 = vmatpush1.bf16.msra.mxu0 0
    %172 = vmatprep.subr.bf16.mxu0 0
    %173 = vmatpush1.bf16.msra.mxu0 0
    %174 = vmatprep.subr.bf16.mxu0 0
    %175 = vmatpush1.bf16.msra.mxu0 0
    %176 = vmatprep.subr.bf16.mxu0 0
    %177 = vmatpush1.bf16.msra.mxu0 0
    %178 = vmatprep.subr.bf16.mxu0 0
    %179 = vmatpush1.bf16.msra.mxu0 0
    %180 = vmatprep.subr.bf16.mxu0 0
    %181 = vmatpush1.bf16.msra.mxu0 0
    %182 = vmatprep.subr.bf16.mxu0 0
    %183 = vmatpush1.bf16.msra.mxu0 0
    %184 = vmatprep.mubr.bf16.mxu0 0
    %185 = vmatmul.mubr.bf16.gmra.mrb[0].mxu0 %v87
    %v186 = vpop.f32.mrb[0].mxu0
    %v187 = vadd.f32 0.0, %v186
    %v188 = vpop.f32.mrb[0].mxu0
    %v189 = vpop.f32.mrb[0].mxu0
    %v190 = vpop.f32.mrb[0].mxu0
    %191 = vdwg.mxu0
    %v192 = vld [vmem:[%s2] sm:$0x1]
    %v193 = vld [vmem:[%s3] sm:$0x1]
    %v194 = vrot.slane %v187, 4
    %v195 = vadd.f32 %v187, %v194
    %v196 = vrot.slane %v195, 2
    %v197 = vadd.f32 %v195, %v196
    %v198 = vrot.slane %v197, 1
    %v199 = vadd.f32 %v197, %v198
    %v200 = vmul.f32 %v187, %v187
    %v201 = vrot.slane %v200, 4
    %v202 = vadd.f32 %v200, %v201
    %v203 = vrot.slane %v202, 2
    %v204 = vadd.f32 %v202, %v203
    %v205 = vrot.slane %v204, 1
    %v206 = vadd.f32 %v204, %v205
    %v207 = vmul.f32 %v199, 0.125
    %v208 = vmul.f32 %v206, 0.125
    %v209 = vmul.f32 %v207, %v207
    %v210 = vsub.f32 %v208, %v209
    %v211 = vmax.f32 %v210, 0.0
    %v212 = vadd.f32 %v211, 1e-05
    %v213 = vrsqrt.pop %v212
    %v214 = vmul.f32 %v192, %v213
    %v215 = vmul.f32 %v207, %v214
    %v216 = vsub.f32 %v193, %v215
    %v218 = vlaneseq
    %v219 = vshrl.u32 %v218, 7
    %v220 = vsub.s32 0, %v219
    %v221 = vrot.slane %v214, %v220
    %v223 = vmul.f32 %v187, %v221
    %v225 = vlaneseq
    %v226 = vshrl.u32 %v225, 7
    %v227 = vsub.s32 0, %v226
    %v228 = vrot.slane %v216, %v227
    %v230 = vadd.f32 %v223, %v228
    %v231 = vmax.f32 %v230, 0.0
    %v232 = vpack.c.bf16 %v231, %v231
    %v233 = vld [vmem:[#allocation7] sm:$0xf]
    %v234 = vld [vmem:[#allocation7 + $0x4] sm:$0xf]
    %v235 = vld [vmem:[#allocation7 + $0x8] sm:$0xf]
    %v236 = vld [vmem:[#allocation7 + $0xc] sm:$0xf]
    %v237 = vld [vmem:[#allocation7 + $0x10] sm:$0xf]
    %v238 = vld [vmem:[#allocation7 + $0x14] sm:$0xf]
    %v239 = vld [vmem:[#allocation7 + $0x18] sm:$0xf]
    %v240 = vld [vmem:[#allocation7 + $0x1c] sm:$0xf]
    %v241 = vld [vmem:[#allocation7 + $0x20] sm:$0xf]
    %v242 = vld [vmem:[#allocation7 + $0x24] sm:$0xf]
    %v243 = vld [vmem:[#allocation7 + $0x28] sm:$0xf]
    %v244 = vld [vmem:[#allocation7 + $0x2c] sm:$0xf]
    %v245 = vld [vmem:[#allocation7 + $0x30] sm:$0xf]
    %v246 = vld [vmem:[#allocation7 + $0x34] sm:$0xf]
    %v247 = vld [vmem:[#allocation7 + $0x38] sm:$0xf]
    %v248 = vld [vmem:[#allocation7 + $0x3c] sm:$0xf]
    %v265 = vunpack.c.l.b16 %v233
    %v266 = vunpack.c.l.b16 %v234
    %v267 = vunpack.c.l.b16 %v235
    %v268 = vunpack.c.l.b16 %v236
    %v269 = vunpack.c.l.b16 %v237
    %v270 = vunpack.c.l.b16 %v238
    %v271 = vunpack.c.l.b16 %v239
    %v272 = vunpack.c.l.b16 %v240
    %v273 = vunpack.c.l.b16 %v241
    %v274 = vunpack.c.l.b16 %v242
    %v275 = vunpack.c.l.b16 %v243
    %v276 = vunpack.c.l.b16 %v244
    %v277 = vunpack.c.l.b16 %v245
    %v278 = vunpack.c.l.b16 %v246
    %v279 = vunpack.c.l.b16 %v247
    %v280 = vunpack.c.l.b16 %v248
    %v281 = vpack.c.b16 %v266, %v265
    %v282 = vpack.c.b16 %v268, %v267
    %v283 = vpack.c.b16 %v270, %v269
    %v284 = vpack.c.b16 %v272, %v271
    %v285 = vpack.c.b16 %v274, %v273
    %v286 = vpack.c.b16 %v276, %v275
    %v287 = vpack.c.b16 %v278, %v277
    %v288 = vpack.c.b16 %v280, %v279
    %297 = vmatprep.subr.bf16.mxu0 0
    %298 = vmatpush1.bf16.msra.mxu0 %v281
    %299 = vmatprep.subr.bf16.mxu0 0
    %300 = vmatpush1.bf16.msra.mxu0 %v282
    %301 = vmatprep.subr.bf16.mxu0 0
    %302 = vmatpush1.bf16.msra.mxu0 %v283
    %303 = vmatprep.subr.bf16.mxu0 0
    %304 = vmatpush1.bf16.msra.mxu0 %v284
    %305 = vmatprep.subr.bf16.mxu0 0
    %306 = vmatpush1.bf16.msra.mxu0 %v285
    %307 = vmatprep.subr.bf16.mxu0 0
    %308 = vmatpush1.bf16.msra.mxu0 %v286
    %309 = vmatprep.subr.bf16.mxu0 0
    %310 = vmatpush1.bf16.msra.mxu0 %v287
    %311 = vmatprep.subr.bf16.mxu0 0
    %312 = vmatpush1.bf16.msra.mxu0 %v288
    %313 = vmatprep.subr.bf16.mxu0 0
    %314 = vmatpush1.bf16.msra.mxu0 0
    %315 = vmatprep.subr.bf16.mxu0 0
    %316 = vmatpush1.bf16.msra.mxu0 0
    %317 = vmatprep.subr.bf16.mxu0 0
    %318 = vmatpush1.bf16.msra.mxu0 0
    %319 = vmatprep.subr.bf16.mxu0 0
    %320 = vmatpush1.bf16.msra.mxu0 0
    %321 = vmatprep.subr.bf16.mxu0 0
    %322 = vmatpush1.bf16.msra.mxu0 0
    %323 = vmatprep.subr.bf16.mxu0 0
    %324 = vmatpush1.bf16.msra.mxu0 0
    %325 = vmatprep.subr.bf16.mxu0 0
    %326 = vmatpush1.bf16.msra.mxu0 0
    %327 = vmatprep.subr.bf16.mxu0 0
    %328 = vmatpush1.bf16.msra.mxu0 0
    %329 = vmatprep.mubr.bf16.mxu0 0
    %330 = vmatmul.mubr.bf16.gmra.mrb[0].mxu0 %v232
    %v331 = vpop.f32.mrb[0].mxu0
    %v332 = vadd.f32 0.0, %v331
    %v333 = vpop.f32.mrb[0].mxu0
    %v334 = vpop.f32.mrb[0].mxu0
    %v335 = vpop.f32.mrb[0].mxu0
    %336 = vdwg.mxu0
    %v337 = vld [vmem:[%s5] sm:$0x1]
    %v338 = vld [vmem:[%s6] sm:$0x1]
    %v339 = vrot.slane %v332, 4
    %v340 = vadd.f32 %v332, %v339
    %v341 = vrot.slane %v340, 2
    %v342 = vadd.f32 %v340, %v341
    %v343 = vrot.slane %v342, 1
    %v344 = vadd.f32 %v342, %v343
    %v345 = vmul.f32 %v332, %v332
    %v346 = vrot.slane %v345, 4
    %v347 = vadd.f32 %v345, %v346
    %v348 = vrot.slane %v347, 2
    %v349 = vadd.f32 %v347, %v348
    %v350 = vrot.slane %v349, 1
    %v351 = vadd.f32 %v349, %v350
    %v352 = vmul.f32 %v344, 0.125
    %v353 = vmul.f32 %v351, 0.125
    %v354 = vmul.f32 %v352, %v352
    %v355 = vsub.f32 %v353, %v354
    %v356 = vmax.f32 %v355, 0.0
    %v357 = vadd.f32 %v356, 1e-05
    %v358 = vrsqrt.pop %v357
    %v359 = vmul.f32 %v337, %v358
    %v360 = vmul.f32 %v352, %v359
    %v361 = vsub.f32 %v338, %v360
    %v363 = vlaneseq
    %v364 = vshrl.u32 %v363, 7
    %v365 = vsub.s32 0, %v364
    %v366 = vrot.slane %v359, %v365
    %v368 = vmul.f32 %v332, %v366
    %v370 = vlaneseq
    %v371 = vshrl.u32 %v370, 7
    %v372 = vsub.s32 0, %v371
    %v373 = vrot.slane %v361, %v372
    %v375 = vadd.f32 %v368, %v373
    %v376 = vmax.f32 %v375, 0.0
    %v377 = vpack.c.bf16 %v376, %v376
    %v378 = vld [vmem:[#allocation8] sm:$0xf]
    %v379 = vld [vmem:[#allocation8 + $0x4] sm:$0xf]
    %v380 = vld [vmem:[#allocation8 + $0x8] sm:$0xf]
    %v381 = vld [vmem:[#allocation8 + $0xc] sm:$0xf]
    %v382 = vld [vmem:[#allocation8 + $0x10] sm:$0xf]
    %v383 = vld [vmem:[#allocation8 + $0x14] sm:$0xf]
    %v384 = vld [vmem:[#allocation8 + $0x18] sm:$0xf]
    %v385 = vld [vmem:[#allocation8 + $0x1c] sm:$0xf]
    %v386 = vld [vmem:[#allocation8 + $0x20] sm:$0xf]
    %v387 = vld [vmem:[#allocation8 + $0x24] sm:$0xf]
    %v388 = vld [vmem:[#allocation8 + $0x28] sm:$0xf]
    %v389 = vld [vmem:[#allocation8 + $0x2c] sm:$0xf]
    %v390 = vld [vmem:[#allocation8 + $0x30] sm:$0xf]
    %v391 = vld [vmem:[#allocation8 + $0x34] sm:$0xf]
    %v392 = vld [vmem:[#allocation8 + $0x38] sm:$0xf]
    %v393 = vld [vmem:[#allocation8 + $0x3c] sm:$0xf]
    %v394 = vld [vmem:[%s8] sm:$0x1]
    %v396 = vlaneseq
    %v397 = vshrl.u32 %v396, 7
    %v398 = vsub.s32 0, %v397
    %v399 = vrot.slane %v394, %v398
    %v417 = vunpack.c.l.b16 %v378
    %v418 = vunpack.c.l.b16 %v379
    %v419 = vunpack.c.l.b16 %v380
    %v420 = vunpack.c.l.b16 %v381
    %v421 = vunpack.c.l.b16 %v382
    %v422 = vunpack.c.l.b16 %v383
    %v423 = vunpack.c.l.b16 %v384
    %v424 = vunpack.c.l.b16 %v385
    %v425 = vunpack.c.l.b16 %v386
    %v426 = vunpack.c.l.b16 %v387
    %v427 = vunpack.c.l.b16 %v388
    %v428 = vunpack.c.l.b16 %v389
    %v429 = vunpack.c.l.b16 %v390
    %v430 = vunpack.c.l.b16 %v391
    %v431 = vunpack.c.l.b16 %v392
    %v432 = vunpack.c.l.b16 %v393
    %v433 = vpack.c.b16 %v418, %v417
    %v434 = vpack.c.b16 %v420, %v419
    %v435 = vpack.c.b16 %v422, %v421
    %v436 = vpack.c.b16 %v424, %v423
    %v437 = vpack.c.b16 %v426, %v425
    %v438 = vpack.c.b16 %v428, %v427
    %v439 = vpack.c.b16 %v430, %v429
    %v440 = vpack.c.b16 %v432, %v431
    %449 = vmatprep.subr.bf16.mxu0 0
    %450 = vmatpush1.bf16.msra.mxu0 %v433
    %451 = vmatprep.subr.bf16.mxu0 0
    %452 = vmatpush1.bf16.msra.mxu0 %v434
    %453 = vmatprep.subr.bf16.mxu0 0
    %454 = vmatpush1.bf16.msra.mxu0 %v435
    %455 = vmatprep.subr.bf16.mxu0 0
    %456 = vmatpush1.bf16.msra.mxu0 %v436
    %457 = vmatprep.subr.bf16.mxu0 0
    %458 = vmatpush1.bf16.msra.mxu0 %v437
    %459 = vmatprep.subr.bf16.mxu0 0
    %460 = vmatpush1.bf16.msra.mxu0 %v438
    %461 = vmatprep.subr.bf16.mxu0 0
    %462 = vmatpush1.bf16.msra.mxu0 %v439
    %463 = vmatprep.subr.bf16.mxu0 0
    %464 = vmatpush1.bf16.msra.mxu0 %v440
    %465 = vmatprep.subr.bf16.mxu0 0
    %466 = vmatpush1.bf16.msra.mxu0 0
    %467 = vmatprep.subr.bf16.mxu0 0
    %468 = vmatpush1.bf16.msra.mxu0 0
    %469 = vmatprep.subr.bf16.mxu0 0
    %470 = vmatpush1.bf16.msra.mxu0 0
    %471 = vmatprep.subr.bf16.mxu0 0
    %472 = vmatpush1.bf16.msra.mxu0 0
    %473 = vmatprep.subr.bf16.mxu0 0
    %474 = vmatpush1.bf16.msra.mxu0 0
    %475 = vmatprep.subr.bf16.mxu0 0
    %476 = vmatpush1.bf16.msra.mxu0 0
    %477 = vmatprep.subr.bf16.mxu0 0
    %478 = vmatpush1.bf16.msra.mxu0 0
    %479 = vmatprep.subr.bf16.mxu0 0
    %480 = vmatpush1.bf16.msra.mxu0 0
    %481 = vmatprep.mubr.bf16.mxu0 0
    %482 = vmatmul.mubr.bf16.gmra.mrb[0].mxu0 %v377
    %v483 = vpop.f32.mrb[0].mxu0
    %v484 = vadd.f32 %v399, %v483
    %v485 = vpop.f32.mrb[0].mxu0
    %v486 = vpop.f32.mrb[0].mxu0
    %v487 = vpop.f32.mrb[0].mxu0
    %488 = vdwg.mxu0
    %489 = vst [vmem:[#allocation10] sm:$0xff] %v484
    // Predicated region
    $region54: #{tpu_custom_call.1} parent=1 // pred_check
      _
    $region55: #{tpu_custom_call.1} parent=1 // pred_check_branch
      %491 = sbr.rel (0) target = $region57
    $region56: #{tpu_custom_call.1} parent=1 // pred_region
      %s493 = ssub.s32 128, 128
      %494 = vsyncadd [#allocation4], %s493
      %s496 = sshll.u32 [#allocation10], 4
      %s497 = int_to_ptr.vmem [resolvable:$true] %s496
      %499 = dma.vmem_to_hbm [thread:$0]  %s497, 128, %s9, [#allocation4]
    $region57: #{tpu_custom_call.1} parent=1 // pred_fallthru
      _
    // Predicated region
    $region58: #{tpu_custom_call.1} parent=1 // pred_check
      _
    $region59: #{tpu_custom_call.1} parent=1 // pred_check_branch
      %501 = sbr.rel (0) target = $region61
    $region60: #{tpu_custom_call.1} parent=1 // pred_region
      %502 = dma.done [#allocation4], 128
    $region61: #{tpu_custom_call.1} parent=1 // pred_fallthru
      _
    %503 = vsyncpa [#allocation3], 1
    %504 = vsyncpa [#allocation6], 1
    %505 = vsyncpa [#allocation9], 1
    %506 = vsyncpa [#allocation4], 1

</llo_original>
